<compile_context>
chip_gen: v6e
topology: v6e:2x2x1
jax: 0.10.0
libtpu: 0.0.40
codegen_flags: <defaults>
</compile_context>

<pallas_src>
import functools

import jax
import jax.numpy as jnp
from jax import lax
from jax.experimental import pallas as pl
from jax.experimental.pallas import tpu as pltpu


def _round_up(n, m):
    return ((n + m - 1) // m) * m


def _sublane_multiple(dtype):
    # Packed sublane tile: f32 -> 8, bf16 -> 16, int8/fp8 -> 32.
    return {4: 8, 2: 16, 1: 32}.get(jnp.dtype(dtype).itemsize, 8)


def _pick_tb(batch, sub, target_rows):
    """~target_rows rows per tile, sublane aligned; prefer an even, >=2-step
    grid (v7x has 2 TensorCores sharing HBM)."""
    n = max(1, -(-batch // target_rows))
    if n > 1 and n % 2 == 1:
        n += 1
    elif n == 1 and batch > sub:
        n = 2
    return max(sub, _round_up(-(-batch // n), sub))


def _vmem_capacity_bytes():
    try:
        return int(pltpu.get_tpu_info().vmem_capacity_bytes)
    except Exception:
        return 64 * 1024 * 1024  # conservative default (v7x per-TC physical)


def _center_loss_resident_kernel(labels_ref, x_ref, c_ref, out_ref, *,
                                 tb, num_classes, valid_rows):
    """labels_ref: VMEM (tb, 1) int32; x_ref: VMEM (tb, D);
    c_ref: VMEM (C, D) resident across all grid steps;
    out_ref: VMEM (1, 8, 128) f32 -- broadcast per-tile partial sum."""
    base = pl.program_id(0) * tb

    x = x_ref[...].astype(jnp.float32)                                # (tb, D)
    lbl = labels_ref[...]                                             # (tb, 1)

    # Exact row selection on the (otherwise idle) MXU.
    class_ids = lax.broadcasted_iota(jnp.int32, (tb, num_classes), 1)
    onehot = (lbl == class_ids).astype(c_ref.dtype)                   # (tb, C)
    c_sel = jnp.dot(onehot, c_ref[...],
                    preferred_element_type=jnp.float32)               # (tb, D)

    d = x - c_sel
    sel = jnp.sum(d * d, axis=1, keepdims=True)                       # (tb, 1)
    sel = jnp.clip(sel, 1e-12, 1e12)

    # Mask padded rows, reduce to a per-tile partial sum, store lane-dense.
    row = base + lax.broadcasted_iota(jnp.int32, (tb, 1), 0)
    sel = jnp.where(row < valid_rows, sel, 0.0)
    tile_sum = jnp.sum(sel, axis=0, keepdims=True)                    # (1, 1)
    out_ref[...] = jnp.broadcast_to(tile_sum[None], (1, 8, 128))


def _center_loss_gather_kernel(labels_ref, x_ref, c_hbm, out_ref,
                               csel_ref, sems, *, tb, valid_rows):
    """Fallback for a centers table too large for VMEM.
    labels_ref: SMEM (B_pad,) int32 (scalar prefetched); c_hbm: HBM (C, D)."""
    base = pl.program_id(0) * tb

    # Gather the tb labelled center rows HBM -> VMEM; all DMAs are in flight
    # concurrently.  Descriptor handles are kept so start()/wait() stay paired.
    copies = []
    for r in range(tb):
        cp = pltpu.make_async_copy(c_hbm.at[labels_ref[base + r]],
                                   csel_ref.at[r], sems.at[r])
        cp.start()
        copies.append(cp)
    for cp in copies:
        cp.wait()
    # TODO(synk): for huge-C deployments, sort/dedup labels in the wrapper so
    # repeated classes coalesce and double-buffer the gather across grid steps.

    x = x_ref[...].astype(jnp.float32)
    c = csel_ref[...].astype(jnp.float32)
    d = x - c
    sel = jnp.clip(jnp.sum(d * d, axis=1, keepdims=True), 1e-12, 1e12)
    row = base + lax.broadcasted_iota(jnp.int32, (tb, 1), 0)
    sel = jnp.where(row < valid_rows, sel, 0.0)
    tile_sum = jnp.sum(sel, axis=0, keepdims=True)
    out_ref[...] = jnp.broadcast_to(tile_sum[None], (1, 8, 128))


def center_loss(x, labels, centers, *, tb=None, force_hbm_gather=False):
    """x: (B, D), labels: (B,) int, centers: (C, D) -> scalar f32 loss."""
    B, D = x.shape
    C, Dc = centers.shape
    assert D == Dc, "feat_dim mismatch between x and centers"
    assert labels.shape[0] == B, "features.size(0) is not equal to labels.size(0)"

    x_sub = _sublane_multiple(x.dtype)
    x_bytes = jnp.dtype(x.dtype).itemsize
    c_bytes = jnp.dtype(centers.dtype).itemsize

    vmem_cap = _vmem_capacity_bytes()
    resident_budget = int(0.45 * vmem_cap)   # headroom: ~28 MiB on v7x, more on v5e/v6e

    def resident_footprint(tile):
        return (2 * C * D * c_bytes           # resident centers (+pipeline copy margin)
                + 2 * tile * D * x_bytes      # double-buffered x tile
                + 2 * tile * 4                # double-buffered labels tile
                + tile * C * 4                # one-hot intermediate
                + 2 * tile * D * 4            # f32 x / selected-centers temporaries
                + (2 << 20))                  # slack

    use_resident = not force_hbm_gather
    if tb is None:
        tb = _pick_tb(B, x_sub, 512 if use_resident else 128)
    tb = max(x_sub, _round_up(tb, x_sub))

    if use_resident:
        # Shrink the batch tile before giving up on a VMEM-resident table.
        while resident_footprint(tb) > resident_budget and tb > x_sub:
            tb = max(x_sub, _round_up(tb // 2, x_sub))
        use_resident = resident_footprint(tb) <= resident_budget

    B_pad = _round_up(B, tb)
    num_tiles = B_pad // tb

    labels_i32 = labels.astype(jnp.int32)
    if B_pad != B:
        # Padded rows are masked inside the kernel before the partial sum.
        x = jnp.pad(x, ((0, B_pad - B), (0, 0)))
        labels_i32 = jnp.pad(labels_i32, (0, B_pad - B))

    out_shape = jax.ShapeDtypeStruct((num_tiles, 8, 128), jnp.float32)

    if use_resident:
        kernel = functools.partial(_center_loss_resident_kernel,
                                   tb=tb, num_classes=C, valid_rows=B)
        vmem_limit = int(min(0.9 * vmem_cap,
                             max(32 << 20, resident_footprint(tb) + (8 << 20))))
        partial_sums = pl.pallas_call(
            kernel,
            out_shape=out_shape,
            grid_spec=pltpu.PrefetchScalarGridSpec(
                num_scalar_prefetch=0,
                grid=(num_tiles,),
                in_specs=[
                    pl.BlockSpec((tb, 1), lambda b: (b, 0)),   # labels tile (VMEM)
                    pl.BlockSpec((tb, D), lambda b: (b, 0)),   # x tile
                    pl.BlockSpec((C, D), lambda b: (0, 0)),    # centers: VMEM-resident
                ],
                out_specs=pl.BlockSpec((1, 8, 128), lambda b: (b, 0, 0)),
            ),
            compiler_params=pltpu.CompilerParams(
                dimension_semantics=("parallel",),
                vmem_limit_bytes=vmem_limit,
            ),
            cost_estimate=pl.CostEstimate(
                flops=2 * B_pad * C * D + 3 * B_pad * D,
                transcendentals=0,
                bytes_accessed=(B_pad * D * x_bytes + C * D * c_bytes
                                + B_pad * 4 + num_tiles * 8 * 128 * 4),
            ),
        )(labels_i32.reshape(B_pad, 1), x, centers)
    else:
        kernel = functools.partial(_center_loss_gather_kernel, tb=tb, valid_rows=B)
        fb_footprint = (2 * tb * D * x_bytes + tb * D * c_bytes
                        + 2 * tb * D * 4 + (2 << 20))
        vmem_limit = int(min(0.9 * vmem_cap,
                             max(32 << 20, fb_footprint + (8 << 20))))
        partial_sums = pl.pallas_call(
            kernel,
            out_shape=out_shape,
            grid_spec=pltpu.PrefetchScalarGridSpec(
                num_scalar_prefetch=1,
                grid=(num_tiles,),
                in_specs=[
                    pl.BlockSpec((tb, D), lambda b, lbl: (b, 0)),   # x tile
                    pl.BlockSpec(memory_space=pl.ANY),              # centers stay in HBM
                ],
                out_specs=pl.BlockSpec((1, 8, 128), lambda b, lbl: (b, 0, 0)),
                scratch_shapes=[
                    pltpu.VMEM((tb, D), centers.dtype),   # gathered center rows
                    pltpu.SemaphoreType.DMA((tb,)),       # one sem per in-flight row DMA
                ],
            ),
            compiler_params=pltpu.CompilerParams(
                dimension_semantics=("parallel",),
                vmem_limit_bytes=vmem_limit,
            ),
            cost_estimate=pl.CostEstimate(
                flops=3 * B_pad * D,
                transcendentals=0,
                bytes_accessed=(B_pad * D * x_bytes + B_pad * D * c_bytes
                                + B_pad * 4 + num_tiles * 8 * 128 * 4),
            ),
        )(labels_i32, x, centers)

    return jnp.sum(partial_sums[:, 0, 0]) / B


def center_loss_ref(x, labels, centers):
    """Pure-JAX reference mirroring the PyTorch distmat formulation."""
    B = x.shape[0]
    x = x.astype(jnp.float32)
    centers = centers.astype(jnp.float32)
    x_sq = jnp.sum(x ** 2, axis=1, keepdims=True)          # (B, 1)
    c_sq = jnp.sum(centers ** 2, axis=1, keepdims=True)    # (C, 1)
    distmat = x_sq + c_sq.T - 2.0 * (x @ centers.T)        # (B, C)
    sel = distmat[jnp.arange(B), labels]
    sel = jnp.clip(sel, 1e-12, 1e12)
    return jnp.mean(sel)


if __name__ == "__main__":
    # Small shapes consistent with the module (num_classes, feat_dim), lane-aligned.
    batch_size = 8
    num_classes = 16
    feat_dim = 128

    key = jax.random.PRNGKey(0)
    k_x, k_c, k_l = jax.random.split(key, 3)

    x = jax.random.normal(k_x, (batch_size, feat_dim), dtype=jnp.float32)
    centers = jax.random.normal(k_c, (num_classes, feat_dim), dtype=jnp.float32)  # torch.randn init
    labels = jax.random.randint(k_l, (batch_size,), 0, num_classes, dtype=jnp.int32)

    ref = center_loss_ref(x, labels, centers)

    # Main path: VMEM-resident centers, one-hot MXU selection, partial sums.
    loss = jax.block_until_ready(center_loss(x, labels, centers))
    assert jnp.allclose(loss, ref, rtol=1e-4, atol=1e-4), (loss, ref)

    # Fallback path (used when the centers table exceeds the VMEM budget):
    # HBM row-gather with kept DMA descriptor handles.
    loss_fb = jax.block_until_ready(
        center_loss(x, labels, centers, force_hbm_gather=True))
    assert jnp.allclose(loss_fb, ref, rtol=1e-4, atol=1e-4), (loss_fb, ref)

    print("KERNEL_OK")
</pallas_src>

<mosaic_0001>
module attributes {stable_mosaic.version = 11 : i64} {
  func.func @_center_loss_resident_kernel(%arg0: i32, %arg1: memref<8x1xi32, #tpu.memory_space<vmem>>, %arg2: memref<8x128xf32, #tpu.memory_space<vmem>>, %arg3: memref<16x128xf32, #tpu.memory_space<vmem>>, %arg4: memref<1x8x128xf32, #tpu.memory_space<vmem>>) attributes {dimension_semantics = [#tpu.dimension_semantics<parallel>], iteration_bounds = array<i64: 1>, scalar_prefetch = 0 : i64, scratch_operands = 0 : i64, tpu.core_type = #tpu.core_type<tc>, window_params = [{transform_indices = @transform_0, window_bounds = array<i64: 8, 1>}, {transform_indices = @transform_1, window_bounds = array<i64: 8, 128>}, {pipeline_mode = #tpu.pipeline_mode<synchronous>, transform_indices = @transform_2, window_bounds = array<i64: 16, 128>}, {transform_indices = @transform_3, window_bounds = array<i64: 1, 8, 128>}]} {
    %c8_i32 = arith.constant 8 : i32
    %0 = arith.muli %arg0, %c8_i32 : i32
    %c0 = arith.constant 0 : index
    %c0_0 = arith.constant 0 : index
    %1 = vector.load %arg2[%c0, %c0_0] : memref<8x128xf32, #tpu.memory_space<vmem>>, vector<8x128xf32>
    %c0_1 = arith.constant 0 : index
    %c0_2 = arith.constant 0 : index
    %2 = vector.load %arg1[%c0_1, %c0_2] : memref<8x1xi32, #tpu.memory_space<vmem>>, vector<8x1xi32>
    %3 = tpu.iota {dimensions = array<i32: 1>} : vector<8x16xi32>
    %4 = vector.broadcast %2 : vector<8x1xi32> to vector<8x16xi32>
    %5 = arith.cmpi eq, %4, %3 : vector<8x16xi32>
    %6 = arith.extui %5 : vector<8x16xi1> to vector<8x16xi32>
    %7 = arith.sitofp %6 : vector<8x16xi32> to vector<8x16xf32>
    %c0_3 = arith.constant 0 : index
    %c0_4 = arith.constant 0 : index
    %8 = vector.load %arg3[%c0_3, %c0_4] : memref<16x128xf32, #tpu.memory_space<vmem>>, vector<16x128xf32>
    %cst = arith.constant dense<0.000000e+00> : vector<8x128xf32>
    %9 = tpu.matmul %7, %8, %cst {dimension_numbers = #tpu.dot_dimension_numbers<[1], [0], [0], [1], [0, 0, 1, 1], [], []>} : vector<8x16xf32>, vector<16x128xf32>, vector<8x128xf32> -> vector<8x128xf32>
    %10 = arith.subf %1, %9 : vector<8x128xf32>
    %11 = arith.mulf %10, %10 : vector<8x128xf32>
    %cst_5 = arith.constant dense<0.000000e+00> : vector<8xf32>
    %12 = vector.multi_reduction <add>, %11, %cst_5 [1] : vector<8x128xf32> to vector<8xf32>
    %13 = vector.shape_cast %12 : vector<8xf32> to vector<8x1xf32>
    %cst_6 = arith.constant 9.99999996E-13 : f32
    %cst_7 = arith.constant 9.99999995E+11 : f32
    %14 = vector.broadcast %cst_6 : f32 to vector<8x1xf32>
    %15 = arith.maximumf %14, %13 : vector<8x1xf32>
    %16 = vector.broadcast %cst_7 : f32 to vector<8x1xf32>
    %17 = arith.minimumf %16, %15 : vector<8x1xf32>
    %18 = tpu.iota {dimensions = array<i32: 0>} : vector<8x1xi32>
    %19 = vector.broadcast %0 : i32 to vector<8x1xi32>
    %20 = arith.addi %19, %18 : vector<8x1xi32>
    %c8_i32_8 = arith.constant 8 : i32
    %21 = vector.broadcast %c8_i32_8 : i32 to vector<8x1xi32>
    %22 = arith.cmpi slt, %20, %21 : vector<8x1xi32>
    %cst_9 = arith.constant 0.000000e+00 : f32
    %23 = vector.broadcast %cst_9 : f32 to vector<8x1xf32>
    %24 = arith.select %22, %17, %23 : vector<8x1xi1>, vector<8x1xf32>
    %cst_10 = arith.constant dense<0.000000e+00> : vector<1xf32>
    %25 = vector.multi_reduction <add>, %24, %cst_10 [0] : vector<8x1xf32> to vector<1xf32>
    %26 = vector.shape_cast %25 : vector<1xf32> to vector<1x1xf32>
    %27 = vector.shape_cast %26 : vector<1x1xf32> to vector<1x1x1xf32>
    %28 = vector.shape_cast %27 : vector<1x1x1xf32> to vector<1x1x1xf32>
    %29 = vector.broadcast %28 : vector<1x1x1xf32> to vector<1x8x128xf32>
    %c0_11 = arith.constant 0 : index
    %c0_12 = arith.constant 0 : index
    %c0_13 = arith.constant 0 : index
    %30 = vector.load %arg4[%c0_11, %c0_12, %c0_13] : memref<1x8x128xf32, #tpu.memory_space<vmem>>, vector<1x8x128xf32>
    tpu.vector_store %arg4[%c0_11, %c0_12, %c0_13], %29 {strides = array<i32>} : memref<1x8x128xf32, #tpu.memory_space<vmem>>, vector<1x8x128xf32>,
    return
  }
  func.func @transform_0(%arg0: i32) -> (i32, i32) {
    %c0_i32 = arith.constant 0 : i32
    %c0_i32_0 = arith.constant 0 : i32
    return %arg0, %c0_i32 : i32, i32
  }
  func.func @transform_1(%arg0: i32) -> (i32, i32) {
    %c0_i32 = arith.constant 0 : i32
    %c0_i32_0 = arith.constant 0 : i32
    return %arg0, %c0_i32 : i32, i32
  }
  func.func @transform_2(%arg0: i32) -> (i32, i32) {
    %c0_i32 = arith.constant 0 : i32
    %c0_i32_0 = arith.constant 0 : i32
    %c0_i32_1 = arith.constant 0 : i32
    return %c0_i32, %c0_i32_0 : i32, i32
  }
  func.func @transform_3(%arg0: i32) -> (i32, i32, i32) {
    %c0_i32 = arith.constant 0 : i32
    %c0_i32_0 = arith.constant 0 : i32
    %c0_i32_1 = arith.constant 0 : i32
    return %arg0, %c0_i32, %c0_i32_0 : i32, i32, i32
  }
}

</mosaic_0001>

<llo_original>
// kernel: tpu_custom_call.1
$region0: #{tpu_custom_call.1}
  #allocation0 [shape = 'u32[]', space=smem, size = 0x4, offset = 0x4, fixed_abs, tag = 'smem constant byte address 0x4 - core index']
  #allocation1 [shape = 'u32[144,128]{1,0:T(1,128)}', space=vmem, size = 0x12000, scoped, tag = 'internal scratch']
  %s0 = inlined_call_operand.vmem [shape: s32[8,1], index: 0, kind: input, shape index: {}]
  %s1 = inlined_call_operand.vmem [shape: f32[8,128], index: 1, kind: input, shape index: {}]
  %s2 = inlined_call_operand.hbm [shape: f32[16,128], index: 2, kind: input, shape index: {}]
  %s3 = inlined_call_operand.hbm [shape: f32[1,8,128], index: 3, kind: output, shape index: {}]
  %s4 = sld [smem:[#allocation0]]
  $region26: #{tpu_custom_call.1} parent=0
    _
  %s6 = ssub.s32 1, %s4
  %s7 = scalar_select 0, %s6, %s4
  $region1: #{tpu_custom_call.1} parent=0
    #allocation2 [shape = 'u8[8192]{0}', space=vmem, size = 0x2000, scoped, tag = 'input window, operand 2, single buffered']
    #allocation3 [shape = 's32[1]{0}', space=sflag, size = 0x4, scoped, tag = 'scoped memory for tpu_custom_call.1']
    #allocation4 [shape = 's32[1]{0}', space=sflag, size = 0x4, scoped, tag = 'scoped memory for tpu_custom_call.1']
    #allocation5 [shape = 'u8[4096]{0}', space=vmem, size = 0x1000, scoped, tag = 'output window, operand 0, single buffered']
    %8 = vsyncpa [#allocation3], 0
    %9 = vsyncpa [#allocation4], 0
    // Predicated region
    $region2: #{tpu_custom_call.1} parent=1 // pred_check
      _
    $region3: #{tpu_custom_call.1} parent=1 // pred_check_branch
      %11 = sbr.rel (0) target = $region5
    $region4: #{tpu_custom_call.1} parent=1 // pred_region
      _
    $region5: #{tpu_custom_call.1} parent=1 // pred_fallthru
      _
    // Predicated region
    $region6: #{tpu_custom_call.1} parent=1 // pred_check
      _
    $region7: #{tpu_custom_call.1} parent=1 // pred_check_branch
      %13 = sbr.rel (0) target = $region9
    $region8: #{tpu_custom_call.1} parent=1 // pred_region
      _
    $region9: #{tpu_custom_call.1} parent=1 // pred_fallthru
      _
    // Predicated region
    $region10: #{tpu_custom_call.1} parent=1 // pred_check
      _
    $region11: #{tpu_custom_call.1} parent=1 // pred_check_branch
      %15 = sbr.rel (0) target = $region13
    $region12: #{tpu_custom_call.1} parent=1 // pred_region
      %s17 = ssub.s32 256, 256
      %18 = vsyncadd [#allocation3], %s17
      %s19 = sshll.u32 [#allocation2], 4
      %s20 = int_to_ptr.vmem [resolvable:$true] %s19
      %25 = dma.hbm_to_vmem [thread:$0]  %s2, 256, %s20, [#allocation3], 128, 128, 8
    $region13: #{tpu_custom_call.1} parent=1 // pred_fallthru
      _
    // Predicated region
    $region14: #{tpu_custom_call.1} parent=1 // pred_check
      _
    $region15: #{tpu_custom_call.1} parent=1 // pred_check_branch
      %27 = sbr.rel (0) target = $region17
    $region16: #{tpu_custom_call.1} parent=1 // pred_region
      %28 = dma.done [#allocation3], 256
    $region17: #{tpu_custom_call.1} parent=1 // pred_fallthru
      _
    %s29 = smul.u32 0, 8
    %v30 = vld [vmem:[%s1] sm:$0xff]
    %v31 = vld [vmem:[%s0] sm:$0xff]
    %v32 = vlaneseq
    %v33 = vand.u32 %v32, 127
    %34 = vset.pattern.permute.xlu0 0
    %35 = vperm.xlu0 %34, %v31
    %v36 = vpop.permute.xlu0 %35
    %vm37 = vcmp.eq.s32.totalorder %v36, %v33
    %v38 = vsel %vm37, 1, 0
    %v39 = vcvt.s32.f32 %v38
    %v40 = vld [vmem:[#allocation2] sm:$0xff]
    %v41 = vld [vmem:[#allocation2 + $0x8] sm:$0xff]
    %vm42 = vcmask 130048
    %v44 = vsel %vm42, %v39, 0
    %46 = vmatprep.subr.mxu0 0.0
    %47 = vmatpush1.msra.mxu0 0.0
    %48 = vmatprep.subr.mxu0 0.0
    %49 = vmatpush1.msra.mxu0 0.0
    %50 = vmatprep.subr.mxu0 0.0
    %51 = vmatpush1.msra.mxu0 0.0
    %52 = vmatprep.subr.mxu0 0.0
    %53 = vmatpush1.msra.mxu0 0.0
    %54 = vmatprep.subr.mxu0 0.0
    %55 = vmatpush1.msra.mxu0 0.0
    %56 = vmatprep.subr.mxu0 0.0
    %57 = vmatpush1.msra.mxu0 0.0
    %58 = vmatprep.subr.mxu0 0.0
    %59 = vmatpush1.msra.mxu0 0.0
    %60 = vmatprep.subr.mxu0 0.0
    %61 = vmatpush1.msra.mxu0 0.0
    %62 = vmatprep.subr.mxu0 0.0
    %63 = vmatpush1.msra.mxu0 0.0
    %64 = vmatprep.subr.mxu0 0.0
    %65 = vmatpush1.msra.mxu0 0.0
    %66 = vmatprep.subr.mxu0 0.0
    %67 = vmatpush1.msra.mxu0 0.0
    %68 = vmatprep.subr.mxu0 0.0
    %69 = vmatpush1.msra.mxu0 0.0
    %70 = vmatprep.subr.mxu0 0.0
    %71 = vmatpush1.msra.mxu0 0.0
    %72 = vmatprep.subr.mxu0 0.0
    %73 = vmatpush1.msra.mxu0 0.0
    %74 = vmatprep.subr.mxu0 0.0
    %75 = vmatpush1.msra.mxu0 %v41
    %76 = vmatprep.subr.mxu0 0.0
    %77 = vmatpush1.msra.mxu0 %v40
    %78 = vmatprep.subr.mxu0 0.0
    %79 = vmatpush2.msra.mxu0 0.0
    %80 = vmatprep.subr.mxu0 0.0
    %81 = vmatpush2.msra.mxu0 0.0
    %82 = vmatprep.subr.mxu0 0.0
    %83 = vmatpush2.msra.mxu0 0.0
    %84 = vmatprep.subr.mxu0 0.0
    %85 = vmatpush2.msra.mxu0 0.0
    %86 = vmatprep.subr.mxu0 0.0
    %87 = vmatpush2.msra.mxu0 0.0
    %88 = vmatprep.subr.mxu0 0.0
    %89 = vmatpush2.msra.mxu0 0.0
    %90 = vmatprep.subr.mxu0 0.0
    %91 = vmatpush2.msra.mxu0 0.0
    %92 = vmatprep.subr.mxu0 0.0
    %93 = vmatpush2.msra.mxu0 0.0
    %94 = vmatprep.subr.mxu0 0.0
    %95 = vmatpush2.msra.mxu0 0.0
    %96 = vmatprep.subr.mxu0 0.0
    %97 = vmatpush2.msra.mxu0 0.0
    %98 = vmatprep.subr.mxu0 0.0
    %99 = vmatpush2.msra.mxu0 0.0
    %100 = vmatprep.subr.mxu0 0.0
    %101 = vmatpush2.msra.mxu0 0.0
    %102 = vmatprep.subr.mxu0 0.0
    %103 = vmatpush2.msra.mxu0 0.0
    %104 = vmatprep.subr.mxu0 0.0
    %105 = vmatpush2.msra.mxu0 0.0
    %106 = vmatprep.subr.mxu0 0.0
    %107 = vmatpush2.msra.mxu0 0.0
    %108 = vmatprep.subr.mxu0 0.0
    %109 = vmatpush2.msra.mxu0 0.0
    %110 = vmatprep.mubr.f32.mxu0 0.0
    %111 = vmatmul.mubr.f32.gmra.mxu0 %v44
    %v112 = vpop.f32.mrf.mxu0
    %v113 = vadd.f32 0.0, %v112
    %v114 = vpop.f32.mrf.mxu0
    %115 = vdwg.mxu0
    %v116 = vsub.f32 %v30, %v113
    %v117 = vmul.f32 %v116, %v116
    %118 = vadd.xlane.f32.xlu0 %v117
    %v119 = vpop.xlane.xlu0 %118
    %v120 = vmax.f32 %v119, 1e-12
    %v121 = vmin.f32 %v120, 1e+12
    %v122 = vlaneseq
    %v123 = vshrl.u32 %v122, 7
    %v124 = vstv %s29
    %v125 = vadd.s32 %v124, %v123
    %vm126 = vcmp.lt.s32.totalorder %v125, 8
    %v127 = vsel %vm126, %v121, 0.0
    %v128 = vrot.slane %v127, 4
    %v129 = vadd.f32 %v127, %v128
    %v130 = vrot.slane %v129, 2
    %v131 = vadd.f32 %v129, %v130
    %v132 = vrot.slane %v131, 1
    %v133 = vadd.f32 %v131, %v132
    %134 = vst [vmem:[#allocation5] sm:$0xff] %v133
    // Predicated region
    $region18: #{tpu_custom_call.1} parent=1 // pred_check
      _
    $region19: #{tpu_custom_call.1} parent=1 // pred_check_branch
      %136 = sbr.rel (0) target = $region21
    $region20: #{tpu_custom_call.1} parent=1 // pred_region
      %s138 = ssub.s32 128, 128
      %139 = vsyncadd [#allocation4], %s138
      %s141 = sshll.u32 [#allocation5], 4
      %s142 = int_to_ptr.vmem [resolvable:$true] %s141
      %144 = dma.vmem_to_hbm [thread:$0]  %s142, 128, %s3, [#allocation4]
    $region21: #{tpu_custom_call.1} parent=1 // pred_fallthru
      _
    // Predicated region
    $region22: #{tpu_custom_call.1} parent=1 // pred_check
      _
    $region23: #{tpu_custom_call.1} parent=1 // pred_check_branch
      %146 = sbr.rel (0) target = $region25
    $region24: #{tpu_custom_call.1} parent=1 // pred_region
      %147 = dma.done [#allocation4], 128
    $region25: #{tpu_custom_call.1} parent=1 // pred_fallthru
      _
    %148 = vsyncpa [#allocation3], 1
    %149 = vsyncpa [#allocation4], 1

</llo_original>
